<compile_context>
chip_gen: v5e
topology: v5e:2x2
jax: 0.10.0
libtpu: 0.0.40
codegen_flags: <defaults>
</compile_context>

<pallas_src>
import functools
from math import sqrt

import jax
import jax.numpy as jnp
from jax.experimental import pallas as pl
from jax.experimental.pallas import tpu as pltpu


def swish(x):
    return x * jax.nn.sigmoid(x)


_G = 16  # row-tile granularity: native bf16 sublane tile is (16, 128)


def _round_up(n, m):
    return ((n + m - 1) // m) * m


def _pick_tile(n, tile):
    # Multiple-of-16 tile; capped so the grid has >= 2 steps (keeps both v7x TensorCores busy).
    n_pad = _round_up(max(n, _G), _G)
    if n_pad <= _G:
        return _G
    half = _round_up((n_pad + 1) // 2, _G)
    return min(tile, half)


def _pad_rows(x, rows_pad):
    n = x.shape[0]
    if n == rows_pad:
        return x
    return jnp.pad(x, ((0, rows_pad - n),) + ((0, 0),) * (x.ndim - 1))


# ---------------------------------------------------------------------------
# Trace-time parameter folding / padding / bf16 cast (exact transformations,
# folding done at HIGHEST precision in f32 before the cast)
# ---------------------------------------------------------------------------
def fold_params(p, matmul_dtype=jnp.bfloat16):
    HI = jax.lax.Precision.HIGHEST
    I = p["W_down"].shape[1]
    Ip = max(128, _round_up(I, 128))
    pad_cols = lambda w: jnp.pad(w, ((0, 0), (0, Ip - I)))
    c = lambda w: w.astype(matmul_dtype)
    fp = {
        "W_ji": c(p["W_ji"]), "b_ji": p["b_ji"],
        "W_kj": c(p["W_kj"]), "b_kj": p["b_kj"],
        # folded bias-free double linears
        "W_rbf12": c(jnp.dot(p["W_rbf1"], p["W_rbf2"], precision=HI)),
        "W_sbf12_p": c(pad_cols(jnp.dot(p["W_sbf1"], p["W_sbf2"], precision=HI))),
        "W_t12_p": c(pad_cols(jnp.dot(p["W_t1"], p["W_t2"], precision=HI))),
        # lane-padded int_emb weights (padding exact: extra cols of W_down are zero,
        # extra rows of W_up are zero, swish(0) = 0)
        "W_down_p": c(pad_cols(p["W_down"])),
        "W_up_p": c(jnp.pad(p["W_up"], ((0, Ip - I), (0, 0)))),
        # rest
        "W_rbf": c(p["W_rbf"]),
        "W_lin": c(p["W_lin"]), "b_lin": p["b_lin"],
        "W_res_b": c(p["W_res_b"]), "b_res_b": p["b_res_b"],
        "W_res_a": c(p["W_res_a"]), "b_res_a": p["b_res_a"],
    }
    return fp, Ip


_CP = functools.partial(pltpu.CompilerParams,
                        dimension_semantics=("parallel",),
                        vmem_limit_bytes=64 * 1024 * 1024)


# ---------------------------------------------------------------------------
# Kernel 1: per-edge stage
#   x_kj  = act(x1 @ W_kj + b_kj) * (rbf0 @ W_rbf12)
#   x_kjd = act(x_kj @ W_down_pad)          (lane-dense, 128 wide, stored bf16)
# (x_ji is recomputed in the final kernel instead of being materialized here)
# ---------------------------------------------------------------------------
def edge_kernel(x1_ref, rbf0_ref, wkj_ref, bkj_ref, wrbf12_ref, wdown_ref, xkjd_out, *, cdt):
    x1 = x1_ref[...].astype(cdt)
    x_kj = swish(jnp.dot(x1, wkj_ref[...], preferred_element_type=jnp.float32) + bkj_ref[...])
    rbf = jnp.dot(rbf0_ref[...].astype(cdt), wrbf12_ref[...],
                  preferred_element_type=jnp.float32)
    x_kj = (x_kj * rbf).astype(cdt)
    xkjd_out[...] = swish(jnp.dot(x_kj, wdown_ref[...],
                                  preferred_element_type=jnp.float32)).astype(cdt)


def edge_stage(x1, rbf0, fp, *, tm, cdt):
    Ep, H = x1.shape
    R = rbf0.shape[1]
    Ip = fp["W_down_p"].shape[1]
    row = lambda i: (i, 0)
    full = lambda i: (0, 0)
    return pl.pallas_call(
        functools.partial(edge_kernel, cdt=cdt),
        grid=(Ep // tm,),
        in_specs=[
            pl.BlockSpec((tm, H), row),
            pl.BlockSpec((tm, R), row),
            pl.BlockSpec((H, H), full),
            pl.BlockSpec((1, H), full),
            pl.BlockSpec((R, H), full),
            pl.BlockSpec((H, Ip), full),
        ],
        out_specs=pl.BlockSpec((tm, Ip), row),
        out_shape=jax.ShapeDtypeStruct((Ep, Ip), cdt),
        compiler_params=_CP(),
    )(x1, rbf0, fp["W_kj"], fp["b_kj"], fp["W_rbf12"], fp["W_down_p"])


# ---------------------------------------------------------------------------
# Kernel 2: per-triplet stage with fused gather
#   gathered = onehot(idx_kj) @ x_kjd_table   (exact row gather on the MXU; table VMEM-resident)
#   m        = gathered * (sbf @ W_sbf12) * (t @ W_t12)
# ---------------------------------------------------------------------------
def triplet_fused_kernel(idx_ref, table_ref, sbf_ref, t_ref, wsbf_ref, wt_ref, m_out, *, cdt):
    tt = sbf_ref.shape[0]
    Ep = table_ref.shape[0]
    idx = idx_ref[...]                                            # (tt, 1) int32
    e_ids = jax.lax.broadcasted_iota(jnp.int32, (tt, Ep), 1)
    onehot = jnp.where(idx == e_ids, 1.0, 0.0).astype(cdt)        # exact 0/1 gather matrix
    gathered = jnp.dot(onehot, table_ref[...], preferred_element_type=jnp.float32)
    s = jnp.dot(sbf_ref[...].astype(cdt), wsbf_ref[...], preferred_element_type=jnp.float32)
    tor = jnp.dot(t_ref[...].astype(cdt), wt_ref[...], preferred_element_type=jnp.float32)
    m_out[...] = (gathered * s * tor).astype(cdt)


def triplet_stage_fused(idx2d, x_kjd, sbf, t, fp, *, tt, cdt):
    Tp, SR = sbf.shape
    SSR = t.shape[1]
    Ep, Ip = x_kjd.shape
    row = lambda i: (i, 0)
    full = lambda i: (0, 0)
    return pl.pallas_call(
        functools.partial(triplet_fused_kernel, cdt=cdt),
        grid=(Tp // tt,),
        in_specs=[
            pl.BlockSpec((tt, 1), row),
            pl.BlockSpec((Ep, Ip), full),   # whole x_kjd table, constant block index -> DMA'd once
            pl.BlockSpec((tt, SR), row),
            pl.BlockSpec((tt, SSR), row),
            pl.BlockSpec((SR, Ip), full),
            pl.BlockSpec((SSR, Ip), full),
        ],
        out_specs=pl.BlockSpec((tt, Ip), row),
        out_shape=jax.ShapeDtypeStruct((Tp, Ip), cdt),
        compiler_params=_CP(),
    )(idx2d, x_kjd, sbf, t, fp["W_sbf12_p"], fp["W_t12_p"])


# Fallback when the x_kjd table is too large to keep VMEM-resident.
def triplet_gathered_kernel(xg_ref, sbf_ref, t_ref, wsbf_ref, wt_ref, m_out, *, cdt):
    s = jnp.dot(sbf_ref[...].astype(cdt), wsbf_ref[...], preferred_element_type=jnp.float32)
    tor = jnp.dot(t_ref[...].astype(cdt), wt_ref[...], preferred_element_type=jnp.float32)
    m_out[...] = (xg_ref[...].astype(jnp.float32) * s * tor).astype(cdt)


def triplet_stage_gathered(xg, sbf, t, fp, *, tt, cdt):
    Tp, Ip = xg.shape
    SR = sbf.shape[1]
    SSR = t.shape[1]
    row = lambda i: (i, 0)
    full = lambda i: (0, 0)
    return pl.pallas_call(
        functools.partial(triplet_gathered_kernel, cdt=cdt),
        grid=(Tp // tt,),
        in_specs=[
            pl.BlockSpec((tt, Ip), row),
            pl.BlockSpec((tt, SR), row),
            pl.BlockSpec((tt, SSR), row),
            pl.BlockSpec((SR, Ip), full),
            pl.BlockSpec((SSR, Ip), full),
        ],
        out_specs=pl.BlockSpec((tt, Ip), row),
        out_shape=jax.ShapeDtypeStruct((Tp, Ip), cdt),
        compiler_params=_CP(),
    )(xg, sbf, t, fp["W_sbf12_p"], fp["W_t12_p"])


# ---------------------------------------------------------------------------
# Kernel 3: per-edge output stage
#   x_ji = act(x1 @ W_ji + b_ji)               (recomputed here; x1 already resident)
#   e1   = x_ji + act(agg @ W_up_pad)
#   e1  -> residual (before skip) -> act(lin(e1)) + x1 -> residual (after skip)
#   e2   = (rbf0 @ W_rbf) * e1
# ---------------------------------------------------------------------------
def final_kernel(agg_ref, x1_ref, rbf0_ref,
                 wji_ref, bji_ref, wup_ref, wb_ref, bb_ref,
                 wlin_ref, blin_ref, wa_ref, ba_ref, wrbf_ref,
                 e1_out, e2_out, *, nb, na, cdt):
    x1 = x1_ref[...]
    x_ji = swish(jnp.dot(x1.astype(cdt), wji_ref[...],
                         preferred_element_type=jnp.float32) + bji_ref[...])
    up = swish(jnp.dot(agg_ref[...], wup_ref[...], preferred_element_type=jnp.float32))
    e1 = x_ji + up
    for l in range(nb):
        h = swish(jnp.dot(e1.astype(cdt), wb_ref[2 * l],
                          preferred_element_type=jnp.float32) + bb_ref[2 * l])
        h = swish(jnp.dot(h.astype(cdt), wb_ref[2 * l + 1],
                          preferred_element_type=jnp.float32) + bb_ref[2 * l + 1])
        e1 = e1 + h
    e1 = swish(jnp.dot(e1.astype(cdt), wlin_ref[...],
                       preferred_element_type=jnp.float32) + blin_ref[...]) + x1
    for l in range(na):
        h = swish(jnp.dot(e1.astype(cdt), wa_ref[2 * l],
                          preferred_element_type=jnp.float32) + ba_ref[2 * l])
        h = swish(jnp.dot(h.astype(cdt), wa_ref[2 * l + 1],
                          preferred_element_type=jnp.float32) + ba_ref[2 * l + 1])
        e1 = e1 + h
    e1_out[...] = e1
    e2_out[...] = jnp.dot(rbf0_ref[...].astype(cdt), wrbf_ref[...],
                          preferred_element_type=jnp.float32) * e1


def final_stage(agg, x1, rbf0, fp, *, nb, na, tm, cdt):
    Ep, H = x1.shape
    Ip = agg.shape[1]
    R = rbf0.shape[1]
    row = lambda i: (i, 0)
    f2 = lambda i: (0, 0)
    f3 = lambda i: (0, 0, 0)
    return pl.pallas_call(
        functools.partial(final_kernel, nb=nb, na=na, cdt=cdt),
        grid=(Ep // tm,),
        in_specs=[
            pl.BlockSpec((tm, Ip), row),
            pl.BlockSpec((tm, H), row),
            pl.BlockSpec((tm, R), row),
            pl.BlockSpec((H, H), f2),          # W_ji
            pl.BlockSpec((1, H), f2),          # b_ji
            pl.BlockSpec((Ip, H), f2),         # W_up (padded rows are zero)
            pl.BlockSpec((2 * nb, H, H), f3),
            pl.BlockSpec((2 * nb, 1, H), f3),
            pl.BlockSpec((H, H), f2),
            pl.BlockSpec((1, H), f2),
            pl.BlockSpec((2 * na, H, H), f3),
            pl.BlockSpec((2 * na, 1, H), f3),
            pl.BlockSpec((R, H), f2),
        ],
        out_specs=(pl.BlockSpec((tm, H), row),
                   pl.BlockSpec((tm, H), row)),
        out_shape=(jax.ShapeDtypeStruct((Ep, H), jnp.float32),
                   jax.ShapeDtypeStruct((Ep, H), jnp.float32)),
        compiler_params=_CP(),
    )(agg, x1, rbf0, fp["W_ji"], fp["b_ji"], fp["W_up_p"], fp["W_res_b"], fp["b_res_b"],
      fp["W_lin"], fp["b_lin"], fp["W_res_a"], fp["b_res_a"], fp["W_rbf"])


# ---------------------------------------------------------------------------
# Full forward
# ---------------------------------------------------------------------------
def update_e_forward(params, x1, rbf0, sbf, t, idx_kj, idx_ji, *, nb, na,
                     tm=512, tt=512, matmul_dtype=jnp.bfloat16):
    E, H = x1.shape
    T = sbf.shape[0]
    fp, Ip = fold_params(params, matmul_dtype)

    tm_e = _pick_tile(E, tm)
    Ep = _round_up(E, tm_e)
    tt_t = _pick_tile(T, tt)
    Tp = _round_up(T, tt_t)

    x1_p = _pad_rows(x1, Ep)
    rbf0_p = _pad_rows(rbf0, Ep)
    sbf_p = _pad_rows(sbf, Tp)
    t_p = _pad_rows(t, Tp)

    x_kjd = edge_stage(x1_p, rbf0_p, fp, tm=tm_e, cdt=matmul_dtype)     # (Ep, Ip) bf16

    table_bytes = Ep * Ip * jnp.dtype(matmul_dtype).itemsize
    if table_bytes <= 12 * 1024 * 1024:
        # gather fused: x_kjd kept VMEM-resident, gathered in-kernel -> no (T, Ip) HBM round trip
        idx2d = _pad_rows(idx_kj.astype(jnp.int32).reshape(-1, 1), Tp)
        m = triplet_stage_fused(idx2d, x_kjd, sbf_p, t_p, fp, tt=tt_t, cdt=matmul_dtype)
    else:
        # TODO(synk): for very large E, replace this XLA gather with in-kernel per-row
        # make_async_copy gathers (several DMAs in flight) instead of a full-table residency.
        xg = _pad_rows(x_kjd[idx_kj], Tp)
        m = triplet_stage_gathered(xg, sbf_p, t_p, fp, tt=tt_t, cdt=matmul_dtype)

    # TODO(synk): scatter-add over irregular idx_ji kept in JAX (segment_sum); a sorted-by-idx_ji
    # in-pipeline segment accumulation (MoE-offset pattern) would remove this HBM round trip.
    agg = jax.ops.segment_sum(m[:T].astype(jnp.float32), idx_ji, num_segments=E)
    agg_p = _pad_rows(agg.astype(matmul_dtype), Ep)

    e1, e2 = final_stage(agg_p, x1_p, rbf0_p, fp, nb=nb, na=na, tm=tm_e, cdt=matmul_dtype)
    return e1[:E], e2[:E]


# ---------------------------------------------------------------------------
# Pure-JAX reference (mirrors the PyTorch module semantics, f32 HIGHEST)
# ---------------------------------------------------------------------------
def reference_forward(p, x1, rbf0, sbf, t, idx_kj, idx_ji, *, nb, na):
    HI = jax.lax.Precision.HIGHEST
    dot = lambda a, b: jnp.dot(a, b, precision=HI)
    x_ji = swish(dot(x1, p["W_ji"]) + p["b_ji"])
    x_kj = swish(dot(x1, p["W_kj"]) + p["b_kj"])
    rbf = dot(dot(rbf0, p["W_rbf1"]), p["W_rbf2"])
    x_kj = x_kj * rbf
    x_kj = swish(dot(x_kj, p["W_down"]))
    s = dot(dot(sbf, p["W_sbf1"]), p["W_sbf2"])
    x_kj = x_kj[idx_kj] * s
    tt = dot(dot(t, p["W_t1"]), p["W_t2"])
    x_kj = x_kj * tt
    x_kj = jax.ops.segment_sum(x_kj, idx_ji, num_segments=x1.shape[0])
    x_kj = swish(dot(x_kj, p["W_up"]))
    e1 = x_ji + x_kj
    for l in range(nb):
        h = swish(dot(e1, p["W_res_b"][2 * l]) + p["b_res_b"][2 * l])
        h = swish(dot(h, p["W_res_b"][2 * l + 1]) + p["b_res_b"][2 * l + 1])
        e1 = e1 + h
    e1 = swish(dot(e1, p["W_lin"]) + p["b_lin"]) + x1
    for l in range(na):
        h = swish(dot(e1, p["W_res_a"][2 * l]) + p["b_res_a"][2 * l])
        h = swish(dot(h, p["W_res_a"][2 * l + 1]) + p["b_res_a"][2 * l + 1])
        e1 = e1 + h
    e2 = dot(rbf0, p["W_rbf"]) * e1
    return e1, e2


# ---------------------------------------------------------------------------
# Deterministic parameter init (glorot-scaled normal; biases zero)
# ---------------------------------------------------------------------------
def init_params(key, H, I, Bd, Ba, Bt, NS, NR, nb, na):
    def glorot(k, shape):
        fan_in, fan_out = shape[-2], shape[-1]
        std = sqrt(2.0 / (fan_in + fan_out))
        return (std * jax.random.normal(k, shape)).astype(jnp.float32)

    ks = jax.random.split(key, 16)
    p = {
        "W_ji": glorot(ks[0], (H, H)),   "b_ji": jnp.zeros((1, H), jnp.float32),
        "W_kj": glorot(ks[1], (H, H)),   "b_kj": jnp.zeros((1, H), jnp.float32),
        "W_rbf1": glorot(ks[2], (NR, Bd)),
        "W_rbf2": glorot(ks[3], (Bd, H)),
        "W_sbf1": glorot(ks[4], (NS * NR, Ba)),
        "W_sbf2": glorot(ks[5], (Ba, I)),
        "W_t1": glorot(ks[6], (NS * NS * NR, Bt)),
        "W_t2": glorot(ks[7], (Bt, I)),
        "W_rbf": glorot(ks[8], (NR, H)),
        "W_down": glorot(ks[9], (H, I)),
        "W_up": glorot(ks[10], (I, H)),
        "W_lin": glorot(ks[11], (H, H)), "b_lin": jnp.zeros((1, H), jnp.float32),
        "W_res_b": glorot(ks[12], (2 * nb, H, H)),
        "b_res_b": jnp.zeros((2 * nb, 1, H), jnp.float32),
        "W_res_a": glorot(ks[13], (2 * na, H, H)),
        "b_res_a": jnp.zeros((2 * na, 1, H), jnp.float32),
    }
    return p


if __name__ == "__main__":
    H, I = 128, 64                     # hidden_channels, int_emb_size
    Bd, Ba, Bt = 8, 8, 8               # basis_emb sizes (dist / angle / torsion)
    NS, NR = 7, 6                      # num_spherical, num_radial
    nb, na = 1, 2                      # num_before_skip, num_after_skip
    E, T = 64, 96                      # num edges, num triplets

    key = jax.random.PRNGKey(0)
    kp, kx, kr, ks, kt, ki, kj = jax.random.split(key, 7)

    params = init_params(kp, H, I, Bd, Ba, Bt, NS, NR, nb, na)

    x1 = jax.random.normal(kx, (E, H), jnp.float32)
    rbf0 = jax.random.normal(kr, (E, NR), jnp.float32)
    sbf = jax.random.normal(ks, (T, NS * NR), jnp.float32)
    t = jax.random.normal(kt, (T, NS * NS * NR), jnp.float32)
    idx_kj = jax.random.randint(ki, (T,), 0, E)
    idx_ji = jax.random.randint(kj, (T,), 0, E)

    e1, e2 = update_e_forward(params, x1, rbf0, sbf, t, idx_kj, idx_ji, nb=nb, na=na)
    jax.block_until_ready((e1, e2))

    e1_ref, e2_ref = reference_forward(params, x1, rbf0, sbf, t, idx_kj, idx_ji, nb=nb, na=na)
    assert e1.shape == (E, H) and e2.shape == (E, H)
    # bf16 matmul operands with f32 accumulation through a deep residual stack:
    # tolerance set for ~1% end-to-end relative error (was 2e-3 for the all-f32 kernel).
    assert jnp.allclose(e1, e1_ref, atol=5e-2, rtol=5e-2), float(jnp.max(jnp.abs(e1 - e1_ref)))
    assert jnp.allclose(e2, e2_ref, atol=5e-2, rtol=5e-2), float(jnp.max(jnp.abs(e2 - e2_ref)))

    print("KERNEL_OK")
</pallas_src>

<mosaic_0001>
module attributes {stable_mosaic.version = 11 : i64} {
  func.func @edge_kernel(%arg0: i32, %arg1: memref<32x128xf32, #tpu.memory_space<vmem>>, %arg2: memref<32x6xf32, #tpu.memory_space<vmem>>, %arg3: memref<128x128xbf16, #tpu.memory_space<vmem>>, %arg4: memref<1x128xf32, #tpu.memory_space<vmem>>, %arg5: memref<6x128xbf16, #tpu.memory_space<vmem>>, %arg6: memref<128x128xbf16, #tpu.memory_space<vmem>>, %arg7: memref<32x128xbf16, #tpu.memory_space<vmem>>) attributes {dimension_semantics = [#tpu.dimension_semantics<parallel>], iteration_bounds = array<i64: 2>, scalar_prefetch = 0 : i64, scratch_operands = 0 : i64, tpu.core_type = #tpu.core_type<tc>, window_params = [{transform_indices = @transform_0, window_bounds = array<i64: 32, 128>}, {transform_indices = @transform_1, window_bounds = array<i64: 32, 6>}, {pipeline_mode = #tpu.pipeline_mode<synchronous>, transform_indices = @transform_2, window_bounds = array<i64: 128, 128>}, {pipeline_mode = #tpu.pipeline_mode<synchronous>, transform_indices = @transform_3, window_bounds = array<i64: 1, 128>}, {pipeline_mode = #tpu.pipeline_mode<synchronous>, transform_indices = @transform_4, window_bounds = array<i64: 6, 128>}, {pipeline_mode = #tpu.pipeline_mode<synchronous>, transform_indices = @transform_5, window_bounds = array<i64: 128, 128>}, {transform_indices = @transform_6, window_bounds = array<i64: 32, 128>}]} {
    %c0 = arith.constant 0 : index
    %c0_0 = arith.constant 0 : index
    %0 = vector.load %arg1[%c0, %c0_0] : memref<32x128xf32, #tpu.memory_space<vmem>>, vector<32x128xf32>
    %1 = arith.truncf %0 : vector<32x128xf32> to vector<32x128xbf16>
    %c0_1 = arith.constant 0 : index
    %c0_2 = arith.constant 0 : index
    %2 = vector.load %arg3[%c0_1, %c0_2] : memref<128x128xbf16, #tpu.memory_space<vmem>>, vector<128x128xbf16>
    %cst = arith.constant dense<0.000000e+00> : vector<32x128xf32>
    %3 = tpu.matmul %1, %2, %cst {dimension_numbers = #tpu.dot_dimension_numbers<[1], [0], [0], [1], [0, 0, 1, 1], [], []>} : vector<32x128xbf16>, vector<128x128xbf16>, vector<32x128xf32> -> vector<32x128xf32>
    %c0_3 = arith.constant 0 : index
    %c0_4 = arith.constant 0 : index
    %4 = vector.load %arg4[%c0_3, %c0_4] : memref<1x128xf32, #tpu.memory_space<vmem>>, vector<1x128xf32>
    %5 = vector.broadcast %4 : vector<1x128xf32> to vector<32x128xf32>
    %6 = arith.addf %3, %5 : vector<32x128xf32>
    %7 = arith.negf %6 : vector<32x128xf32>
    %8 = math.exp %7 : vector<32x128xf32>
    %cst_5 = arith.constant 1.000000e+00 : f32
    %9 = vector.broadcast %cst_5 : f32 to vector<32x128xf32>
    %10 = arith.addf %9, %8 : vector<32x128xf32>
    %11 = arith.divf %9, %10 : vector<32x128xf32>
    %12 = arith.mulf %6, %11 : vector<32x128xf32>
    %c0_6 = arith.constant 0 : index
    %c0_7 = arith.constant 0 : index
    %13 = vector.load %arg2[%c0_6, %c0_7] : memref<32x6xf32, #tpu.memory_space<vmem>>, vector<32x6xf32>
    %14 = arith.truncf %13 : vector<32x6xf32> to vector<32x6xbf16>
    %c0_8 = arith.constant 0 : index
    %c0_9 = arith.constant 0 : index
    %15 = vector.load %arg5[%c0_8, %c0_9] : memref<6x128xbf16, #tpu.memory_space<vmem>>, vector<6x128xbf16>
    %cst_10 = arith.constant dense<0.000000e+00> : vector<32x128xf32>
    %16 = tpu.matmul %14, %15, %cst_10 {dimension_numbers = #tpu.dot_dimension_numbers<[1], [0], [0], [1], [0, 0, 1, 1], [], []>} : vector<32x6xbf16>, vector<6x128xbf16>, vector<32x128xf32> -> vector<32x128xf32>
    %17 = arith.mulf %12, %16 : vector<32x128xf32>
    %18 = arith.truncf %17 : vector<32x128xf32> to vector<32x128xbf16>
    %c0_11 = arith.constant 0 : index
    %c0_12 = arith.constant 0 : index
    %19 = vector.load %arg6[%c0_11, %c0_12] : memref<128x128xbf16, #tpu.memory_space<vmem>>, vector<128x128xbf16>
    %cst_13 = arith.constant dense<0.000000e+00> : vector<32x128xf32>
    %20 = tpu.matmul %18, %19, %cst_13 {dimension_numbers = #tpu.dot_dimension_numbers<[1], [0], [0], [1], [0, 0, 1, 1], [], []>} : vector<32x128xbf16>, vector<128x128xbf16>, vector<32x128xf32> -> vector<32x128xf32>
    %21 = arith.negf %20 : vector<32x128xf32>
    %22 = math.exp %21 : vector<32x128xf32>
    %cst_14 = arith.constant 1.000000e+00 : f32
    %23 = vector.broadcast %cst_14 : f32 to vector<32x128xf32>
    %24 = arith.addf %23, %22 : vector<32x128xf32>
    %25 = arith.divf %23, %24 : vector<32x128xf32>
    %26 = arith.mulf %20, %25 : vector<32x128xf32>
    %27 = arith.truncf %26 : vector<32x128xf32> to vector<32x128xbf16>
    %c0_15 = arith.constant 0 : index
    %c0_16 = arith.constant 0 : index
    %28 = vector.load %arg7[%c0_15, %c0_16] : memref<32x128xbf16, #tpu.memory_space<vmem>>, vector<32x128xbf16>
    tpu.vector_store %arg7[%c0_15, %c0_16], %27 {strides = array<i32>} : memref<32x128xbf16, #tpu.memory_space<vmem>>, vector<32x128xbf16>,
    return
  }
  func.func @transform_0(%arg0: i32) -> (i32, i32) {
    %c0_i32 = arith.constant 0 : i32
    %c0_i32_0 = arith.constant 0 : i32
    return %arg0, %c0_i32 : i32, i32
  }
  func.func @transform_1(%arg0: i32) -> (i32, i32) {
    %c0_i32 = arith.constant 0 : i32
    %c0_i32_0 = arith.constant 0 : i32
    return %arg0, %c0_i32 : i32, i32
  }
  func.func @transform_2(%arg0: i32) -> (i32, i32) {
    %c0_i32 = arith.constant 0 : i32
    %c0_i32_0 = arith.constant 0 : i32
    %c0_i32_1 = arith.constant 0 : i32
    return %c0_i32, %c0_i32_0 : i32, i32
  }
  func.func @transform_3(%arg0: i32) -> (i32, i32) {
    %c0_i32 = arith.constant 0 : i32
    %c0_i32_0 = arith.constant 0 : i32
    %c0_i32_1 = arith.constant 0 : i32
    return %c0_i32, %c0_i32_0 : i32, i32
  }
  func.func @transform_4(%arg0: i32) -> (i32, i32) {
    %c0_i32 = arith.constant 0 : i32
    %c0_i32_0 = arith.constant 0 : i32
    %c0_i32_1 = arith.constant 0 : i32
    return %c0_i32, %c0_i32_0 : i32, i32
  }
  func.func @transform_5(%arg0: i32) -> (i32, i32) {
    %c0_i32 = arith.constant 0 : i32
    %c0_i32_0 = arith.constant 0 : i32
    %c0_i32_1 = arith.constant 0 : i32
    return %c0_i32, %c0_i32_0 : i32, i32
  }
  func.func @transform_6(%arg0: i32) -> (i32, i32) {
    %c0_i32 = arith.constant 0 : i32
    %c0_i32_0 = arith.constant 0 : i32
    return %arg0, %c0_i32 : i32, i32
  }
}

</mosaic_0001>

<llo_original>
// kernel: tpu_custom_call.1
$region0: #{tpu_custom_call.1}
  #allocation0 [shape = 'u32[]', space=smem, size = 0x4, offset = 0x4, fixed_abs, tag = 'smem constant byte address 0x4 - core index']
  #allocation1 [shape = 'u32[72,128]{1,0:T(1,128)}', space=vmem, size = 0x9000, scoped, tag = 'internal scratch']
  %s0 = inlined_call_operand.vmem [shape: f32[64,128], index: 0, kind: input, shape index: {}]
  %s1 = inlined_call_operand.vmem [shape: f32[64,6], index: 1, kind: input, shape index: {}]
  %s2 = inlined_call_operand.hbm [shape: bf16[128,128], index: 2, kind: input, shape index: {}]
  %s3 = inlined_call_operand.vmem [shape: f32[1,128], index: 3, kind: input, shape index: {}]
  %s4 = inlined_call_operand.vmem [shape: bf16[6,128], index: 4, kind: input, shape index: {}]
  %s5 = inlined_call_operand.hbm [shape: bf16[128,128], index: 5, kind: input, shape index: {}]
  %s6 = inlined_call_operand.hbm [shape: bf16[64,128], index: 6, kind: output, shape index: {}]
  %s7 = sld [smem:[#allocation0]]
  $region65: #{tpu_custom_call.1} parent=0
    _
  %s9 = ssub.s32 1, %s7
  %s10 = scalar_select 0, %s9, %s7
  $region1: #{tpu_custom_call.1} parent=0
    #allocation2 [shape = 'u8[32768]{0}', space=vmem, size = 0x8000, scoped, tag = 'input window, operand 2, single buffered']
    #allocation3 [shape = 's32[2]{0}', space=sflag, size = 0x8, scoped, tag = 'scoped memory for tpu_custom_call.1']
    #allocation4 [shape = 's32[2]{0}', space=sflag, size = 0x8, scoped, tag = 'scoped memory for tpu_custom_call.1']
    #allocation5 [shape = 'u8[32768]{0}', space=vmem, size = 0x8000, scoped, tag = 'input window, operand 5, single buffered']
    #allocation6 [shape = 's32[1]{0}', space=sflag, size = 0x4, scoped, tag = 'scoped memory for tpu_custom_call.1']
    #allocation7 [shape = 'u8[16384]{0}', space=vmem, size = 0x4000, scoped, tag = 'output window, operand 0']
    %11 = vsyncpa [#allocation3], 0
    %12 = vsyncpa [#allocation6], 0
    %13 = vsyncpa [#allocation4], 0
    %s14 = scalar_lea.sflag [#allocation4], 1
    %15 = vsyncpa %s14, 0
    loop: start=0, step=1, limit=4
    $region2: #{tpu_custom_call.1} parent=1 // loop_pre_header
      _
    $region3: #{tpu_custom_call.1} parent=1 // loop_header
      %s17 = sphi 0, %s21
      %p18 = scmp.ge.s32.totalorder %s17, 4
      %s27 = sphi 0, %s29
      %s30 = sphi 0, %s27
      %s31 = sphi 0, %s30
      %s47 = sphi 0, %s31
      %s53 = sphi 0, %s55
      %s56 = sphi 0, %s53
      %s57 = sphi 0, %s56
      %s73 = sphi 0, %s57
      %s77 = sphi 0, %s77
      %s79 = sphi 0, %s77
      %s80 = sphi 0, %s79
      %s94 = sphi 0, %s80
      %s98 = sphi 0, %s98
      %s100 = sphi 0, %s98
      %s101 = sphi 0, %s100
      %s115 = sphi 0, %s101
      %s119 = sphi 0, %s119
      %s121 = sphi 0, %s119
      %s122 = sphi 0, %s121
      %s136 = sphi 0, %s122
      %s140 = sphi 0, %s140
      %s142 = sphi 0, %s140
      %s143 = sphi 0, %s142
      %s157 = sphi 0, %s143
      %s163 = sphi 0, %s165
      %s166 = sphi 0, %s163
      %s167 = sphi 0, %s166
      %s183 = sphi 0, %s167
    $region4: #{tpu_custom_call.1} parent=1 // loop_header_branch
      %20 = sbr.rel (%p18) target = $region8
    $region5: #{tpu_custom_call.1} parent=1 // loop_body
      %s22 = ssub.s32 %s17, 1
      %s23 = ssub.s32 %s17, 2
      %s24 = sadd.s32 %s17, 1
      %s25 = ssub.s32 %s17, %s24
      %p26 = scmp.eq.s32.totalorder %s25, 0
      %s28 = sadd.s32 %s27, 1
      %s29 = scalar_select %p26, %s27, %s28
      %p32 = pneg %p26
      %p33 = scmp.eq.s32.totalorder %s17, 1
      %p34 = por %p32, %p33
      %p35 = scmp.ne.s32.totalorder %s27, %s30
      %p36 = scmp.eq.s32.totalorder %s17, 0
      %p37 = por %p35, %p36
      %p38 = scmp.ne.s32.totalorder %s27, %s30
      %p39 = scmp.eq.s32.totalorder %s22, 1
      %p40 = por %p38, %p39
      %p41 = scmp.ne.s32.totalorder %s30, %s31
      %p42 = scmp.eq.s32.totalorder %s22, 0
      %p43 = por %p41, %p42
      %p44 = scmp.ne.s32.totalorder %s30, %s31
      %p45 = scmp.eq.s32.totalorder %s23, 1
      %p46 = por %p44, %p45
      %p48 = scmp.ne.s32.totalorder %s31, %s47
      %p49 = scmp.eq.s32.totalorder %s23, 0
      %p50 = por %p48, %p49
      %s51 = ssub.s32 %s17, %s24
      %p52 = scmp.eq.s32.totalorder %s51, 0
      %s54 = sadd.s32 %s53, 1
      %s55 = scalar_select %p52, %s53, %s54
      %p58 = pneg %p52
      %p59 = scmp.eq.s32.totalorder %s17, 1
      %p60 = por %p58, %p59
      %p61 = scmp.ne.s32.totalorder %s53, %s56
      %p62 = scmp.eq.s32.totalorder %s17, 0
      %p63 = por %p61, %p62
      %p64 = scmp.ne.s32.totalorder %s53, %s56
      %p65 = scmp.eq.s32.totalorder %s22, 1
      %p66 = por %p64, %p65
      %p67 = scmp.ne.s32.totalorder %s56, %s57
      %p68 = scmp.eq.s32.totalorder %s22, 0
      %p69 = por %p67, %p68
      %p70 = scmp.ne.s32.totalorder %s56, %s57
      %p71 = scmp.eq.s32.totalorder %s23, 1
      %p72 = por %p70, %p71
      %p74 = scmp.ne.s32.totalorder %s57, %s73
      %p75 = scmp.eq.s32.totalorder %s23, 0
      %p76 = por %p74, %p75
      %s78 = sadd.s32 %s77, 1
      %p81 = scmp.eq.s32.totalorder %s17, 1
      %p82 = scmp.ne.s32.totalorder %s77, %s79
      %p83 = scmp.eq.s32.totalorder %s17, 0
      %p84 = por %p82, %p83
      %p85 = scmp.ne.s32.totalorder %s77, %s79
      %p86 = scmp.eq.s32.totalorder %s22, 1
      %p87 = por %p85, %p86
      %p88 = scmp.ne.s32.totalorder %s79, %s80
      %p89 = scmp.eq.s32.totalorder %s22, 0
      %p90 = por %p88, %p89
      %p91 = scmp.ne.s32.totalorder %s79, %s80
      %p92 = scmp.eq.s32.totalorder %s23, 1
      %p93 = por %p91, %p92
      %p95 = scmp.ne.s32.totalorder %s80, %s94
      %p96 = scmp.eq.s32.totalorder %s23, 0
      %p97 = por %p95, %p96
      %s99 = sadd.s32 %s98, 1
      %p102 = scmp.eq.s32.totalorder %s17, 1
      %p103 = scmp.ne.s32.totalorder %s98, %s100
      %p104 = scmp.eq.s32.totalorder %s17, 0
      %p105 = por %p103, %p104
      %p106 = scmp.ne.s32.totalorder %s98, %s100
      %p107 = scmp.eq.s32.totalorder %s22, 1
      %p108 = por %p106, %p107
      %p109 = scmp.ne.s32.totalorder %s100, %s101
      %p110 = scmp.eq.s32.totalorder %s22, 0
      %p111 = por %p109, %p110
      %p112 = scmp.ne.s32.totalorder %s100, %s101
      %p113 = scmp.eq.s32.totalorder %s23, 1
      %p114 = por %p112, %p113
      %p116 = scmp.ne.s32.totalorder %s101, %s115
      %p117 = scmp.eq.s32.totalorder %s23, 0
      %p118 = por %p116, %p117
      %s120 = sadd.s32 %s119, 1
      %p123 = scmp.eq.s32.totalorder %s17, 1
      %p124 = scmp.ne.s32.totalorder %s119, %s121
      %p125 = scmp.eq.s32.totalorder %s17, 0
      %p126 = por %p124, %p125
      %p127 = scmp.ne.s32.totalorder %s119, %s121
      %p128 = scmp.eq.s32.totalorder %s22, 1
      %p129 = por %p127, %p128
      %p130 = scmp.ne.s32.totalorder %s121, %s122
      %p131 = scmp.eq.s32.totalorder %s22, 0
      %p132 = por %p130, %p131
      %p133 = scmp.ne.s32.totalorder %s121, %s122
      %p134 = scmp.eq.s32.totalorder %s23, 1
      %p135 = por %p133, %p134
      %p137 = scmp.ne.s32.totalorder %s122, %s136
      %p138 = scmp.eq.s32.totalorder %s23, 0
      %p139 = por %p137, %p138
      %s141 = sadd.s32 %s140, 1
      %p144 = scmp.eq.s32.totalorder %s17, 1
      %p145 = scmp.ne.s32.totalorder %s140, %s142
      %p146 = scmp.eq.s32.totalorder %s17, 0
      %p147 = por %p145, %p146
      %p148 = scmp.ne.s32.totalorder %s140, %s142
      %p149 = scmp.eq.s32.totalorder %s22, 1
      %p150 = por %p148, %p149
      %p151 = scmp.ne.s32.totalorder %s142, %s143
      %p152 = scmp.eq.s32.totalorder %s22, 0
      %p153 = por %p151, %p152
      %p154 = scmp.ne.s32.totalorder %s142, %s143
      %p155 = scmp.eq.s32.totalorder %s23, 1
      %p156 = por %p154, %p155
      %p158 = scmp.ne.s32.totalorder %s143, %s157
      %p159 = scmp.eq.s32.totalorder %s23, 0
      %p160 = por %p158, %p159
      %s161 = ssub.s32 %s17, %s24
      %p162 = scmp.eq.s32.totalorder %s161, 0
      %s164 = sadd.s32 %s163, 1
      %s165 = scalar_select %p162, %s163, %s164
      %p168 = pneg %p162
      %p169 = scmp.eq.s32.totalorder %s17, 1
      %p170 = por %p168, %p169
      %p171 = scmp.ne.s32.totalorder %s163, %s166
      %p172 = scmp.eq.s32.totalorder %s17, 0
      %p173 = por %p171, %p172
      %p174 = scmp.ne.s32.totalorder %s163, %s166
      %p175 = scmp.eq.s32.totalorder %s22, 1
      %p176 = por %p174, %p175
      %p177 = scmp.ne.s32.totalorder %s166, %s167
      %p178 = scmp.eq.s32.totalorder %s22, 0
      %p179 = por %p177, %p178
      %p180 = scmp.ne.s32.totalorder %s166, %s167
      %p181 = scmp.eq.s32.totalorder %s23, 1
      %p182 = por %p180, %p181
      %p184 = scmp.ne.s32.totalorder %s167, %s183
      %p185 = scmp.eq.s32.totalorder %s23, 0
      %p186 = por %p184, %p185
      %p187 = scmp.le.s32.totalorder 1, %s17
      %p188 = scmp.lt.s32.totalorder %s17, 3
      %p189 = pnand %p187, %p188
      %p190 = pneg %p189
      // Predicated region
      $region9: #{tpu_custom_call.1} parent=5 // pred_check
        _
      $region10: #{tpu_custom_call.1} parent=5 // pred_check_branch
        %192 = sbr.rel (%p189) target = $region12
      $region11: #{tpu_custom_call.1} parent=5 // pred_region
        %s193 = ssub.s32 %s17, 1
        // Predicated region
        $region13: #{tpu_custom_call.1} parent=11 // pred_check
          %p194 = pneg %p90
        $region14: #{tpu_custom_call.1} parent=11 // pred_check_branch
          %196 = sbr.rel (%p194) target = $region16
        $region15: #{tpu_custom_call.1} parent=11 // pred_region
          %198 = vsyncadd [#allocation3], 0
          %s199 = sshll.u32 %s2, 4
          %s200 = int_to_ptr.hbm [resolvable:$true] %s199
          %s201 = sshll.u32 [#allocation2], 4
          %s202 = int_to_ptr.vmem [resolvable:$true] %s201
          %207 = dma.hbm_to_vmem [thread:$0]  %s200, 1024, %s202, [#allocation3], 64, 64, 4
        $region16: #{tpu_custom_call.1} parent=11 // pred_fallthru
          _
        // Predicated region
        $region17: #{tpu_custom_call.1} parent=11 // pred_check
          %p208 = pneg %p111
        $region18: #{tpu_custom_call.1} parent=11 // pred_check_branch
          %210 = sbr.rel (%p208) target = $region20
        $region19: #{tpu_custom_call.1} parent=11 // pred_region
          _
        $region20: #{tpu_custom_call.1} parent=11 // pred_fallthru
          _
        // Predicated region
        $region21: #{tpu_custom_call.1} parent=11 // pred_check
          %p211 = pneg %p132
        $region22: #{tpu_custom_call.1} parent=11 // pred_check_branch
          %213 = sbr.rel (%p211) target = $region24
        $region23: #{tpu_custom_call.1} parent=11 // pred_region
          _
        $region24: #{tpu_custom_call.1} parent=11 // pred_fallthru
          _
        // Predicated region
        $region25: #{tpu_custom_call.1} parent=11 // pred_check
          %p214 = pneg %p153
        $region26: #{tpu_custom_call.1} parent=11 // pred_check_branch
          %216 = sbr.rel (%p214) target = $region28
        $region27: #{tpu_custom_call.1} parent=11 // pred_region
          %218 = vsyncadd [#allocation6], 0
          %s219 = sshll.u32 %s5, 4
          %s220 = int_to_ptr.hbm [resolvable:$true] %s219
          %s221 = sshll.u32 [#allocation5], 4
          %s222 = int_to_ptr.vmem [resolvable:$true] %s221
          %227 = dma.hbm_to_vmem [thread:$0]  %s220, 1024, %s222, [#allocation6], 64, 64, 4
        $region28: #{tpu_custom_call.1} parent=11 // pred_fallthru
          _
      $region12: #{tpu_custom_call.1} parent=5 // pred_fallthru
        _
      %p228 = scmp.lt.s32.totalorder %s17, 2
      // Predicated region
      $region29: #{tpu_custom_call.1} parent=5 // pred_check
        %p229 = pneg %p228
      $region30: #{tpu_custom_call.1} parent=5 // pred_check_branch
        %231 = sbr.rel (%p229) target = $region32
      $region31: #{tpu_custom_call.1} parent=5 // pred_region
        // Predicated region
        $region33: #{tpu_custom_call.1} parent=31 // pred_check
          %p232 = pneg %p37
        $region34: #{tpu_custom_call.1} parent=31 // pred_check_branch
          %234 = sbr.rel (%p232) target = $region36
        $region35: #{tpu_custom_call.1} parent=31 // pred_region
          %s235 = smul.u32 4, %s17
          %p236 = scmp.lt.s32.totalorder %s235, 7
          %s237 = scalar_select %p236, %s235, 7
          %s238 = smul.addr %s237, 8
          %s239 = scalar_lea.vmem %s0, %s238
          %s240 = smul.u32 4, %s17
        $region36: #{tpu_custom_call.1} parent=31 // pred_fallthru
          _
        // Predicated region
        $region37: #{tpu_custom_call.1} parent=31 // pred_check
          %p241 = pneg %p63
        $region38: #{tpu_custom_call.1} parent=31 // pred_check_branch
          %243 = sbr.rel (%p241) target = $region40
        $region39: #{tpu_custom_call.1} parent=31 // pred_region
          %s244 = smul.u32 4, %s17
          %p245 = scmp.lt.s32.totalorder %s244, 7
          %s246 = scalar_select %p245, %s244, 7
          %s247 = smul.addr %s246, 8
          %s248 = scalar_lea.vmem %s1, %s247
          %s249 = smul.u32 4, %s17
        $region40: #{tpu_custom_call.1} parent=31 // pred_fallthru
          _
      $region32: #{tpu_custom_call.1} parent=5 // pred_fallthru
        _
      %p250 = scmp.le.s32.totalorder 1, %s17
      %p251 = scmp.lt.s32.totalorder %s17, 3
      %p252 = pnand %p250, %p251
      %p253 = pneg %p252
      // Predicated region
      $region41: #{tpu_custom_call.1} parent=5 // pred_check
        _
      $region42: #{tpu_custom_call.1} parent=5 // pred_check_branch
        %255 = sbr.rel (%p252) target = $region44
      $region43: #{tpu_custom_call.1} parent=5 // pred_region
        %s256 = ssub.s32 %s17, 1
        // Predicated region
        $region45: #{tpu_custom_call.1} parent=43 // pred_check
          %p257 = pneg %p90
        $region46: #{tpu_custom_call.1} parent=43 // pred_check_branch
          %259 = sbr.rel (%p257) target = $region48
        $region47: #{tpu_custom_call.1} parent=43 // pred_region
          %261 = dma.done [#allocation3], 1024
        $region48: #{tpu_custom_call.1} parent=43 // pred_fallthru
          _
        // Predicated region
        $region49: #{tpu_custom_call.1} parent=43 // pred_check
          %p262 = pneg %p153
        $region50: #{tpu_custom_call.1} parent=43 // pred_check_branch
          %264 = sbr.rel (%p262) target = $region52
        $region51: #{tpu_custom_call.1} parent=43 // pred_region
          %266 = dma.done [#allocation6], 1024
        $region52: #{tpu_custom_call.1} parent=43 // pred_fallthru
          _
        %s267 = smul.u32 4, %s22
        %p268 = scmp.lt.s32.totalorder %s267, 7
        %s269 = scalar_select %p268, %s267, 7
        %s270 = smul.addr %s269, 8
        %s271 = scalar_lea.vmem %s0, %s270
        %p272 = pneg %p43
        %p273 = pneg %p40
        %s274 = smul.u32 4, %s22
        %p275 = scmp.lt.s32.totalorder %s274, 7
        %s276 = scalar_select %p275, %s274, 7
        %s277 = smul.addr %s276, 8
        %s278 = scalar_lea.vmem %s1, %s277
        %p279 = pneg %p69
        %p280 = pneg %p66
        %p281 = pneg %p90
        %p282 = pneg %p87
        %p283 = pneg %p111
        %p284 = pneg %p108
        %p285 = pneg %p132
        %p286 = pneg %p129
        %p287 = pneg %p153
        %p288 = pneg %p150
        %p289 = pneg %p179
        %p290 = pneg %p176
        %s291 = sand.u32 %s166, 1
        %s292 = scalar_lea.sflag [#allocation4], %s291
        %s293 = sand.u32 %s166, 1
        %s294 = smul.addr %s293, 16
        %s295 = scalar_lea.vmem [#allocation7], %s294
        %s296 = smul.u32 4, %s22
        %p297 = scmp.lt.s32.totalorder %s296, 7
        %s298 = scalar_select %p297, %s296, 7
        %s299 = smul.addr %s298, 8
        %s300 = scalar_lea.vmem %s0, %s299
        %s301 = smul.u32 4, %s22
        %s302 = smul.u32 4, %s22
        %p303 = scmp.lt.s32.totalorder %s302, 7
        %s304 = scalar_select %p303, %s302, 7
        %s305 = smul.addr %s304, 8
        %s306 = scalar_lea.vmem %s1, %s305
        %s307 = smul.u32 4, %s22
        %s308 = smul.u32 4, %s22
        %v310 = vld [vmem:[%s300] sm:$0xff]
        %v311 = vld [vmem:[%s300 + $0x8] sm:$0xff]
        %v312 = vld [vmem:[%s300 + $0x10] sm:$0xff]
        %v313 = vld [vmem:[%s300 + $0x18] sm:$0xff]
        %v314 = vpack.c.bf16 %v311, %v310
        %v315 = vpack.c.bf16 %v313, %v312
        %v316 = vld [vmem:[#allocation2] sm:$0xf]
        %v317 = vld [vmem:[#allocation2 + $0x4] sm:$0xf]
        %v318 = vld [vmem:[#allocation2 + $0x8] sm:$0xf]
        %v319 = vld [vmem:[#allocation2 + $0xc] sm:$0xf]
        %v320 = vld [vmem:[#allocation2 + $0x10] sm:$0xf]
        %v321 = vld [vmem:[#allocation2 + $0x14] sm:$0xf]
        %v322 = vld [vmem:[#allocation2 + $0x18] sm:$0xf]
        %v323 = vld [vmem:[#allocation2 + $0x1c] sm:$0xf]
        %v324 = vld [vmem:[#allocation2 + $0x20] sm:$0xf]
        %v325 = vld [vmem:[#allocation2 + $0x24] sm:$0xf]
        %v326 = vld [vmem:[#allocation2 + $0x28] sm:$0xf]
        %v327 = vld [vmem:[#allocation2 + $0x2c] sm:$0xf]
        %v328 = vld [vmem:[#allocation2 + $0x30] sm:$0xf]
        %v329 = vld [vmem:[#allocation2 + $0x34] sm:$0xf]
        %v330 = vld [vmem:[#allocation2 + $0x38] sm:$0xf]
        %v331 = vld [vmem:[#allocation2 + $0x3c] sm:$0xf]
        %v332 = vld [vmem:[%s3] sm:$0x1]
        %v334 = vperm.slane %v332, 0
        %v352 = vunpack.c.l.b16 %v316
        %v353 = vunpack.c.l.b16 %v317
        %v354 = vunpack.c.l.b16 %v318
        %v355 = vunpack.c.l.b16 %v319
        %v356 = vunpack.c.l.b16 %v320
        %v357 = vunpack.c.l.b16 %v321
        %v358 = vunpack.c.l.b16 %v322
        %v359 = vunpack.c.l.b16 %v323
        %v360 = vunpack.c.l.b16 %v324
        %v361 = vunpack.c.l.b16 %v325
        %v362 = vunpack.c.l.b16 %v326
        %v363 = vunpack.c.l.b16 %v327
        %v364 = vunpack.c.l.b16 %v328
        %v365 = vunpack.c.l.b16 %v329
        %v366 = vunpack.c.l.b16 %v330
        %v367 = vunpack.c.l.b16 %v331
        %v368 = vpack.c.b16 %v353, %v352
        %v369 = vpack.c.b16 %v355, %v354
        %v370 = vpack.c.b16 %v357, %v356
        %v371 = vpack.c.b16 %v359, %v358
        %v372 = vpack.c.b16 %v361, %v360
        %v373 = vpack.c.b16 %v363, %v362
        %v374 = vpack.c.b16 %v365, %v364
        %v375 = vpack.c.b16 %v367, %v366
        %384 = vmatpush.bf16.msra.mxu0 %v375
        %385 = vmatpush.bf16.msra.mxu0 %v374
        %386 = vmatpush.bf16.msra.mxu0 %v373
        %387 = vmatpush.bf16.msra.mxu0 %v372
        %388 = vmatpush.bf16.msra.mxu0 %v371
        %389 = vmatpush.bf16.msra.mxu0 %v370
        %390 = vmatpush.bf16.msra.mxu0 %v369
        %391 = vmatpush.bf16.msra.mxu0 %v368
        %392 = vmatmul.bf16.gmra.mxu0 %v314
        %v393 = vpop.f32.mrf.mxu0
        %v394 = vadd.f32 %v334, %v393
        %v395 = vpop.f32.mrf.mxu0
        %v396 = vadd.f32 %v334, %v395
        %397 = vmatmul.bf16.gmra.mxu0 %v315
        %v398 = vpop.f32.mrf.mxu0
        %v399 = vadd.f32 %v334, %v398
        %v400 = vpop.f32.mrf.mxu0
        %v401 = vadd.f32 %v334, %v400
        %402 = vdwg.mxu0
        %v403 = vxor.u32 %v394, 2147483648
        %v404 = vxor.u32 %v396, 2147483648
        %v405 = vxor.u32 %v399, 2147483648
        %v406 = vxor.u32 %v401, 2147483648
        %v407 = vmul.f32 %v403, 1.442695
        %v408 = vpow.pop %v407
        %v409 = vmul.f32 %v404, 1.442695
        %v410 = vpow.pop %v409
        %v411 = vmul.f32 %v405, 1.442695
        %v412 = vpow.pop %v411
        %v413 = vmul.f32 %v406, 1.442695
        %v414 = vpow.pop %v413
        %v415 = vadd.f32 %v408, 1.0
        %v416 = vadd.f32 %v410, 1.0
        %v417 = vadd.f32 %v412, 1.0
        %v418 = vadd.f32 %v414, 1.0
        %v419 = vrcp.pop %v415
        %v420 = vmul.f32 %v415, %v419
        %v421 = vsub.f32 1.0, %v420
        %v422 = vmul.f32 %v419, %v421
        %v423 = vadd.f32 %v419, %v422
        %vm424 = vweird.f32 %v415
        %vm425 = vweird.f32 %v419
        %vm426 = vmor %vm424, %vm425
        %v427 = vsel %vm426, %v419, %v423
        %v428 = vand.u32 2147483647, %v415
        %vm429 = vcmp.eq.f32.partialorder %v428, 8.507059e+37
        %v430 = vand.u32 %v415, 2147483648
        %v431 = vor.u32 1.1754944e-38, %v430
        %v432 = vsel %vm429, %v431, %v427
        %v433 = vmul.f32 1.0, %v432
        %v434 = vrcp.pop %v416
        %v435 = vmul.f32 %v416, %v434
        %v436 = vsub.f32 1.0, %v435
        %v437 = vmul.f32 %v434, %v436
        %v438 = vadd.f32 %v434, %v437
        %vm439 = vweird.f32 %v416
        %vm440 = vweird.f32 %v434
        %vm441 = vmor %vm439, %vm440
        %v442 = vsel %vm441, %v434, %v438
        %v443 = vand.u32 2147483647, %v416
        %vm444 = vcmp.eq.f32.partialorder %v443, 8.507059e+37
        %v445 = vand.u32 %v416, 2147483648
        %v446 = vor.u32 1.1754944e-38, %v445
        %v447 = vsel %vm444, %v446, %v442
        %v448 = vmul.f32 1.0, %v447
        %v449 = vrcp.pop %v417
        %v450 = vmul.f32 %v417, %v449
        %v451 = vsub.f32 1.0, %v450
        %v452 = vmul.f32 %v449, %v451
        %v453 = vadd.f32 %v449, %v452
        %vm454 = vweird.f32 %v417
        %vm455 = vweird.f32 %v449
        %vm456 = vmor %vm454, %vm455
        %v457 = vsel %vm456, %v449, %v453
        %v458 = vand.u32 2147483647, %v417
        %vm459 = vcmp.eq.f32.partialorder %v458, 8.507059e+37
        %v460 = vand.u32 %v417, 2147483648
        %v461 = vor.u32 1.1754944e-38, %v460
        %v462 = vsel %vm459, %v461, %v457
        %v463 = vmul.f32 1.0, %v462
        %v464 = vrcp.pop %v418
        %v465 = vmul.f32 %v418, %v464
        %v466 = vsub.f32 1.0, %v465
        %v467 = vmul.f32 %v464, %v466
        %v468 = vadd.f32 %v464, %v467
        %vm469 = vweird.f32 %v418
        %vm470 = vweird.f32 %v464
        %vm471 = vmor %vm469, %vm470
        %v472 = vsel %vm471, %v464, %v468
        %v473 = vand.u32 2147483647, %v418
        %vm474 = vcmp.eq.f32.partialorder %v473, 8.507059e+37
        %v475 = vand.u32 %v418, 2147483648
        %v476 = vor.u32 1.1754944e-38, %v475
        %v477 = vsel %vm474, %v476, %v472
        %v478 = vmul.f32 1.0, %v477
        %v479 = vmul.f32 %v394, %v433
        %v480 = vmul.f32 %v396, %v448
        %v481 = vmul.f32 %v399, %v463
        %v482 = vmul.f32 %v401, %v478
        %v483 = vld [vmem:[%s306] sm:$0xff]
        %v484 = vld [vmem:[%s306 + $0x8] sm:$0xff]
        %v485 = vld [vmem:[%s306 + $0x10] sm:$0xff]
        %v486 = vld [vmem:[%s306 + $0x18] sm:$0xff]
        %v487 = vpack.c.bf16 %v484, %v483
        %v488 = vpack.c.bf16 %v486, %v485
        %v489 = vld [vmem:[%s4] sm:$0x7]
        %vm490 = vcmask 48128
        %v492 = vsel %vm490, %v487, 0
        %v495 = vsel %vm490, %v488, 0
        %vm497 = vcmask 1042432
        %v499 = vsel %vm497, %v489, 0
        %501 = vmatpush.bf16.msra.mxu0 0
        %502 = vmatpush.bf16.msra.mxu0 0
        %503 = vmatpush.bf16.msra.mxu0 0
        %504 = vmatpush.bf16.msra.mxu0 0
        %505 = vmatpush.bf16.msra.mxu0 0
        %506 = vmatpush.bf16.msra.mxu0 0
        %507 = vmatpush.bf16.msra.mxu0 0
        %508 = vmatpush.bf16.msra.mxu0 %v499
        %509 = vmatmul.bf16.gmra.mxu0 %v492
        %v510 = vpop.f32.mrf.mxu0
        %v511 = vadd.f32 0.0, %v510
        %v512 = vpop.f32.mrf.mxu0
        %v513 = vadd.f32 0.0, %v512
        %514 = vmatmul.bf16.gmra.mxu0 %v495
        %v515 = vpop.f32.mrf.mxu0
        %v516 = vadd.f32 0.0, %v515
        %v517 = vpop.f32.mrf.mxu0
        %v518 = vadd.f32 0.0, %v517
        %519 = vdwg.mxu0
        %v520 = vmul.f32 %v479, %v511
        %v521 = vmul.f32 %v480, %v513
        %v522 = vmul.f32 %v481, %v516
        %v523 = vmul.f32 %v482, %v518
        %v524 = vpack.c.bf16 %v521, %v520
        %v525 = vpack.c.bf16 %v523, %v522
        %v526 = vld [vmem:[#allocation5] sm:$0xf]
        %v527 = vld [vmem:[#allocation5 + $0x4] sm:$0xf]
        %v528 = vld [vmem:[#allocation5 + $0x8] sm:$0xf]
        %v529 = vld [vmem:[#allocation5 + $0xc] sm:$0xf]
        %v530 = vld [vmem:[#allocation5 + $0x10] sm:$0xf]
        %v531 = vld [vmem:[#allocation5 + $0x14] sm:$0xf]
        %v532 = vld [vmem:[#allocation5 + $0x18] sm:$0xf]
        %v533 = vld [vmem:[#allocation5 + $0x1c] sm:$0xf]
        %v534 = vld [vmem:[#allocation5 + $0x20] sm:$0xf]
        %v535 = vld [vmem:[#allocation5 + $0x24] sm:$0xf]
        %v536 = vld [vmem:[#allocation5 + $0x28] sm:$0xf]
        %v537 = vld [vmem:[#allocation5 + $0x2c] sm:$0xf]
        %v538 = vld [vmem:[#allocation5 + $0x30] sm:$0xf]
        %v539 = vld [vmem:[#allocation5 + $0x34] sm:$0xf]
        %v540 = vld [vmem:[#allocation5 + $0x38] sm:$0xf]
        %v541 = vld [vmem:[#allocation5 + $0x3c] sm:$0xf]
        %v558 = vunpack.c.l.b16 %v526
        %v559 = vunpack.c.l.b16 %v527
        %v560 = vunpack.c.l.b16 %v528
        %v561 = vunpack.c.l.b16 %v529
        %v562 = vunpack.c.l.b16 %v530
        %v563 = vunpack.c.l.b16 %v531
        %v564 = vunpack.c.l.b16 %v532
        %v565 = vunpack.c.l.b16 %v533
        %v566 = vunpack.c.l.b16 %v534
        %v567 = vunpack.c.l.b16 %v535
        %v568 = vunpack.c.l.b16 %v536
        %v569 = vunpack.c.l.b16 %v537
        %v570 = vunpack.c.l.b16 %v538
        %v571 = vunpack.c.l.b16 %v539
        %v572 = vunpack.c.l.b16 %v540
        %v573 = vunpack.c.l.b16 %v541
        %v574 = vpack.c.b16 %v559, %v558
        %v575 = vpack.c.b16 %v561, %v560
        %v576 = vpack.c.b16 %v563, %v562
        %v577 = vpack.c.b16 %v565, %v564
        %v578 = vpack.c.b16 %v567, %v566
        %v579 = vpack.c.b16 %v569, %v568
        %v580 = vpack.c.b16 %v571, %v570
        %v581 = vpack.c.b16 %v573, %v572
        %590 = vmatpush.bf16.msra.mxu0 %v581
        %591 = vmatpush.bf16.msra.mxu0 %v580
        %592 = vmatpush.bf16.msra.mxu0 %v579
        %593 = vmatpush.bf16.msra.mxu0 %v578
        %594 = vmatpush.bf16.msra.mxu0 %v577
        %595 = vmatpush.bf16.msra.mxu0 %v576
        %596 = vmatpush.bf16.msra.mxu0 %v575
        %597 = vmatpush.bf16.msra.mxu0 %v574
        %598 = vmatmul.bf16.gmra.mxu0 %v524
        %v599 = vpop.f32.mrf.mxu0
        %v600 = vadd.f32 0.0, %v599
        %v601 = vpop.f32.mrf.mxu0
        %v602 = vadd.f32 0.0, %v601
        %603 = vmatmul.bf16.gmra.mxu0 %v525
        %v604 = vpop.f32.mrf.mxu0
        %v605 = vadd.f32 0.0, %v604
        %v606 = vpop.f32.mrf.mxu0
        %v607 = vadd.f32 0.0, %v606
        %608 = vdwg.mxu0
        %v609 = vxor.u32 %v600, 2147483648
        %v610 = vxor.u32 %v602, 2147483648
        %v611 = vxor.u32 %v605, 2147483648
        %v612 = vxor.u32 %v607, 2147483648
        %v613 = vmul.f32 %v609, 1.442695
        %v614 = vpow.pop %v613
        %v615 = vmul.f32 %v610, 1.442695
        %v616 = vpow.pop %v615
        %v617 = vmul.f32 %v611, 1.442695
        %v618 = vpow.pop %v617
        %v619 = vmul.f32 %v612, 1.442695
        %v620 = vpow.pop %v619
        %v621 = vadd.f32 %v614, 1.0
        %v622 = vadd.f32 %v616, 1.0
        %v623 = vadd.f32 %v618, 1.0
        %v624 = vadd.f32 %v620, 1.0
        %v625 = vrcp.pop %v621
        %v626 = vmul.f32 %v621, %v625
        %v627 = vsub.f32 1.0, %v626
        %v628 = vmul.f32 %v625, %v627
        %v629 = vadd.f32 %v625, %v628
        %vm630 = vweird.f32 %v621
        %vm631 = vweird.f32 %v625
        %vm632 = vmor %vm630, %vm631
        %v633 = vsel %vm632, %v625, %v629
        %v634 = vand.u32 2147483647, %v621
        %vm635 = vcmp.eq.f32.partialorder %v634, 8.507059e+37
        %v636 = vand.u32 %v621, 2147483648
        %v637 = vor.u32 1.1754944e-38, %v636
        %v638 = vsel %vm635, %v637, %v633
        %v639 = vmul.f32 1.0, %v638
        %v640 = vrcp.pop %v622
        %v641 = vmul.f32 %v622, %v640
        %v642 = vsub.f32 1.0, %v641
        %v643 = vmul.f32 %v640, %v642
        %v644 = vadd.f32 %v640, %v643
        %vm645 = vweird.f32 %v622
        %vm646 = vweird.f32 %v640
        %vm647 = vmor %vm645, %vm646
        %v648 = vsel %vm647, %v640, %v644
        %v649 = vand.u32 2147483647, %v622
        %vm650 = vcmp.eq.f32.partialorder %v649, 8.507059e+37
        %v651 = vand.u32 %v622, 2147483648
        %v652 = vor.u32 1.1754944e-38, %v651
        %v653 = vsel %vm650, %v652, %v648
        %v654 = vmul.f32 1.0, %v653
        %v655 = vrcp.pop %v623
        %v656 = vmul.f32 %v623, %v655
        %v657 = vsub.f32 1.0, %v656
        %v658 = vmul.f32 %v655, %v657
        %v659 = vadd.f32 %v655, %v658
        %vm660 = vweird.f32 %v623
        %vm661 = vweird.f32 %v655
        %vm662 = vmor %vm660, %vm661
        %v663 = vsel %vm662, %v655, %v659
        %v664 = vand.u32 2147483647, %v623
        %vm665 = vcmp.eq.f32.partialorder %v664, 8.507059e+37
        %v666 = vand.u32 %v623, 2147483648
        %v667 = vor.u32 1.1754944e-38, %v666
        %v668 = vsel %vm665, %v667, %v663
        %v669 = vmul.f32 1.0, %v668
        %v670 = vrcp.pop %v624
        %v671 = vmul.f32 %v624, %v670
        %v672 = vsub.f32 1.0, %v671
        %v673 = vmul.f32 %v670, %v672
        %v674 = vadd.f32 %v670, %v673
        %vm675 = vweird.f32 %v624
        %vm676 = vweird.f32 %v670
        %vm677 = vmor %vm675, %vm676
        %v678 = vsel %vm677, %v670, %v674
        %v679 = vand.u32 2147483647, %v624
        %vm680 = vcmp.eq.f32.partialorder %v679, 8.507059e+37
        %v681 = vand.u32 %v624, 2147483648
        %v682 = vor.u32 1.1754944e-38, %v681
        %v683 = vsel %vm680, %v682, %v678
        %v684 = vmul.f32 1.0, %v683
        %v685 = vmul.f32 %v600, %v639
        %v686 = vmul.f32 %v602, %v654
        %v687 = vmul.f32 %v605, %v669
        %v688 = vmul.f32 %v607, %v684
        %v689 = vpack.c.bf16 %v685, %v685
        %v690 = vpack.c.bf16 %v686, %v686
        %v691 = vpack.c.bf16 %v687, %v687
        %v692 = vpack.c.bf16 %v688, %v688
        %693 = vst [vmem:[%s295] sm:$0xf] %v689
        %694 = vst [vmem:[%s295 + $0x4] sm:$0xf] %v690
        %695 = vst [vmem:[%s295 + $0x8] sm:$0xf] %v691
        %696 = vst [vmem:[%s295 + $0xc] sm:$0xf] %v692
        %s697 = sand.u32 %s166, 1
        %s698 = scalar_lea.sflag [#allocation4], %s697
        %s699 = sand.u32 %s166, 1
        %s700 = smul.addr %s699, 16
        %s701 = scalar_lea.vmem [#allocation7], %s700
        // Predicated region
        $region53: #{tpu_custom_call.1} parent=43 // pred_check
          %p702 = pneg %p176
        $region54: #{tpu_custom_call.1} parent=43 // pred_check_branch
          %704 = sbr.rel (%p702) target = $region56
        $region55: #{tpu_custom_call.1} parent=43 // pred_region
          %s705 = smul.u32 4, %s22
          %707 = vsyncadd %s698, 0
          %s708 = smul.addr %s705, 4
          %s709 = scalar_lea.hbm %s6, %s708
          %s710 = sshll.u32 %s701, 4
          %s711 = int_to_ptr.vmem [resolvable:$true] %s710
          %s712 = sshll.u32 %s709, 4
          %s713 = int_to_ptr.hbm [resolvable:$true] %s712
          %718 = dma.vmem_to_hbm [thread:$0]  %s711, 256, %s713, %s698, 64, 64, 4
        $region56: #{tpu_custom_call.1} parent=43 // pred_fallthru
          _
      $region44: #{tpu_custom_call.1} parent=5 // pred_fallthru
        _
      %p719 = scmp.le.s32.totalorder 2, %s17
      // Predicated region
      $region57: #{tpu_custom_call.1} parent=5 // pred_check
        %p720 = pneg %p719
      $region58: #{tpu_custom_call.1} parent=5 // pred_check_branch
        %722 = sbr.rel (%p720) target = $region60
      $region59: #{tpu_custom_call.1} parent=5 // pred_region
        %s723 = ssub.s32 %s17, 2
        // Predicated region
        $region61: #{tpu_custom_call.1} parent=59 // pred_check
          %p724 = pneg %p182
        $region62: #{tpu_custom_call.1} parent=59 // pred_check_branch
          %726 = sbr.rel (%p724) target = $region64
        $region63: #{tpu_custom_call.1} parent=59 // pred_region
          %s727 = sand.u32 %s167, 1
          %s728 = scalar_lea.sflag [#allocation4], %s727
          %s729 = sand.u32 %s167, 1
          %s730 = smul.addr %s729, 16
          %s731 = scalar_lea.vmem [#allocation7], %s730
          %733 = dma.done %s728, 256
        $region64: #{tpu_custom_call.1} parent=59 // pred_fallthru
          _
      $region60: #{tpu_custom_call.1} parent=5 // pred_fallthru
        _
    $region6: #{tpu_custom_call.1} parent=1 // loop_footer
      %s21 = sadd.s32 1, %s17
    $region7: #{tpu_custom_call.1} parent=1 // loop_footer_branch
      %16 = sbr.rel target = $region3
    $region8: #{tpu_custom_call.1} parent=1 // loop_exit
      _
    %734 = vsyncpa [#allocation3], 1
    %s735 = scalar_lea.sflag [#allocation3], 1
    %736 = vsyncpa %s735, 1
    %737 = vsyncpa [#allocation6], 1
    %738 = vsyncpa [#allocation4], 1
    %s739 = scalar_lea.sflag [#allocation4], 1
    %740 = vsyncpa %s739, 1

</llo_original>
